<compile_context>
chip_gen: v7x
topology: tpu7x:2x2x1
jax: 0.10.0
libtpu: 0.0.40
codegen_flags: <defaults>
</compile_context>

<pallas_src>
import functools

import jax
import jax.numpy as jnp
import numpy as np
from jax import lax
from jax.experimental import pallas as pl
from jax.experimental.pallas import tpu as pltpu

NEG_SLOPE = 0.2      # GATConv default negative_slope
MASK_VAL = -1e30     # finite f32 mask sentinel
LANES = 128          # lane width of the packed input buffer
OUT_LANES = 128      # lane-dense output width (sliced back to F in the wrapper)


def _ru(v, m):
    return (v + m - 1) // m * m


def simple_gnn_kernel(scal_ref, buf_ref, out_ref, *, n, feat, hidden):
    """Fused Simple_GNN forward.

    scal_ref : SMEM f32[4]            = [a_src2, a_dst2, b2, 0]
    buf_ref  : VMEM f32[R, 128]       packed inputs, every block 8-sublane aligned:
               rows [0, ru8(N))       : x            [N, F]
               rows [ru8(N), 2*ru8(N)): adj          [N, N]   adj[i,j]=1 iff edge j->i
               rows [2*ru8(N), ...)   : params block:
                   +0 .. +F-1 : [W1 @ a_dst1 | W1]   (col 0 of x@this = e_dst, cols 1..H = h)
                   +F         : [0 | b1]
                   +F+1       : [0 | w2^T]
                   +F+2       : a_src1 @ W1^T        (first F lanes used)
    out_ref  : VMEM f32[N, 128]       col 0 = conv2 output, cols 1.. = zeros (ConstantPad1d)
    """
    haugw = hidden + 1
    radj = _ru(n, 8)
    rpar = radj + _ru(n, 8)

    # Single dense load; everything below slices the in-register value (no masked Ref loads).
    buf = buf_ref[...]

    x = buf[0:n, 0:feat]                                       # [N, F]
    adj = buf[radj:radj + n, 0:n]                              # [N, N]
    w1_aug = buf[rpar:rpar + feat, 0:haugw]                    # [F, H+1]
    b1_aug = buf[rpar + feat:rpar + feat + 1, 0:haugw]         # [1, H+1]
    w2_aug = buf[rpar + feat + 1:rpar + feat + 2, 0:haugw]     # [1, H+1]
    vsrc1 = buf[rpar + feat + 2:rpar + feat + 3, 0:feat]       # [1, F]

    a_src2 = scal_ref[0]
    a_dst2 = scal_ref[1]
    b2 = scal_ref[2]

    # ---------------- layer 1: GATConv(F -> H) ----------------
    # One MXU op gives e_dst (col 0) and h (cols 1..H).
    haug = jnp.dot(x, w1_aug, preferred_element_type=jnp.float32)       # [N, H+1]
    e_dst1 = haug[:, 0:1]                                               # [N, 1]
    # e_src[j] = a_src1 . h_j = x_j . (W1 @ a_src1^T), computed directly off x -> [1, N]
    e_src1 = lax.dot_general(vsrc1, x, (((1,), (1,)), ((), ())),
                             preferred_element_type=jnp.float32)        # [1, N]

    z1 = e_dst1 + e_src1                                                # [N, N], z1[i, j]
    z1 = jnp.where(z1 >= 0, z1, NEG_SLOPE * z1)                         # LeakyReLU
    z1 = jnp.where(adj > 0, z1, MASK_VAL)                               # mask non-edges pre-max
    m1 = jnp.max(z1, axis=-1, keepdims=True)
    p1 = jnp.exp(z1 - m1)                                               # masked entries underflow to 0
    denom1 = jnp.maximum(jnp.sum(p1, axis=-1, keepdims=True), 1e-20)    # guard isolated nodes
    alpha1 = p1 / denom1                                                # exact division in layer 1

    # Aggregate the augmented h (junk col 0 is cancelled by the zero padding of b1_aug/w2_aug).
    h1 = jnp.dot(alpha1, haug, preferred_element_type=jnp.float32) + b1_aug   # [N, H+1]
    h1 = jnp.maximum(h1, 0.0)                                                 # ReLU

    # ---------------- layer 2: GATConv(H -> 1), VPU/XLU path ----------------
    # g = h1 @ w2 is needed both as a column (dst term) and as a row (src term + aggregation).
    g_col = jnp.sum(h1 * w2_aug, axis=-1, keepdims=True)                # [N, 1]  VPU mul + lane reduce
    g_row = lax.dot_general(w2_aug, h1, (((1,), (1,)), ((), ())),
                            preferred_element_type=jnp.float32)         # [1, N]

    z2 = a_dst2 * g_col + a_src2 * g_row                                # [N, N]
    z2 = jnp.where(z2 >= 0, z2, NEG_SLOPE * z2)
    z2 = jnp.where(adj > 0, z2, MASK_VAL)
    m2 = jnp.max(z2, axis=-1, keepdims=True)
    p2 = jnp.exp(z2 - m2)
    denom2 = jnp.maximum(jnp.sum(p2, axis=-1, keepdims=True), 1e-20)
    # alpha2 @ g as broadcast-multiply + lane reduce (no 1-column MXU matmul).
    h2 = jnp.sum(p2 * g_row, axis=-1, keepdims=True) * pl.reciprocal(denom2, approx=True) + b2

    # ---------------- ConstantPad1d((0, F-1), 0): single composed full-tile store ----------------
    lane = lax.broadcasted_iota(jnp.int32, (n, OUT_LANES), 1)
    out_ref[...] = jnp.where(lane == 0, h2, 0.0)


def simple_gnn_forward(x, adj, params):
    n, f = x.shape
    h = params["w1"].shape[1]
    assert max(n, f, h + 1) <= LANES, "whole-graph kernel assumes N, F, H+1 <= 128"

    def pad2(a, rows, cols):
        return jnp.pad(a, ((0, rows - a.shape[0]), (0, cols - a.shape[1])))

    # Fold a_dst projection into W1 (col 0 of x@W1_aug = e_dst, cols 1..H = h).
    w1_aug = jnp.concatenate([params["w1"] @ params["a_dst1"], params["w1"]], axis=1)    # [F, H+1]
    b1_aug = jnp.concatenate([jnp.zeros((1, 1), jnp.float32), params["b1"]], axis=1)     # [1, H+1]
    w2_aug = jnp.concatenate([jnp.zeros((1, 1), jnp.float32), params["w2"].T], axis=1)   # [1, H+1]
    vsrc1 = params["a_src1"] @ params["w1"].T                                            # [1, F]

    rx = _ru(n, 8)
    radj = _ru(n, 8)
    rpar = _ru(f + 3, 8)

    par_rows = jnp.concatenate(
        [pad2(w1_aug, f, LANES), pad2(b1_aug, 1, LANES),
         pad2(w2_aug, 1, LANES), pad2(vsrc1, 1, LANES)], axis=0)                         # [F+3, 128]
    buf = jnp.concatenate(
        [pad2(x, rx, LANES), pad2(adj, radj, LANES), pad2(par_rows, rpar, LANES)], axis=0
    ).astype(jnp.float32)                                                                # [R, 128]

    scal = jnp.concatenate(
        [params["a_src2"].reshape(-1), params["a_dst2"].reshape(-1),
         params["b2"].reshape(-1), jnp.zeros((1,), jnp.float32)]
    ).astype(jnp.float32)                                                                # [4]

    flops = (2 * n * f * (h + 1)       # x @ W1_aug
             + 2 * n * f               # e_src projection
             + 2 * n * n * (h + 1)     # alpha1 @ haug
             + 4 * n * (h + 1)         # layer-2 g_col / g_row
             + 12 * n * n)             # softmax / attention elementwise
    transcendentals = 2 * n * n + 2 * n
    bytes_accessed = 4 * (int(buf.size) + int(scal.size) + n * OUT_LANES)

    kernel = functools.partial(simple_gnn_kernel, n=n, feat=f, hidden=h)
    out_full = pl.pallas_call(
        kernel,
        out_shape=jax.ShapeDtypeStruct((n, OUT_LANES), jnp.float32),
        in_specs=[
            pl.BlockSpec(memory_space=pltpu.MemorySpace.SMEM),   # layer-2 scalars
            pl.BlockSpec(memory_space=pltpu.MemorySpace.VMEM),   # packed x | adj | params
        ],
        out_specs=pl.BlockSpec(memory_space=pltpu.MemorySpace.VMEM),
        cost_estimate=pl.CostEstimate(flops=flops, transcendentals=transcendentals,
                                      bytes_accessed=bytes_accessed),
    )(scal, buf)
    return out_full[:, :f]                                      # lane-dense slab -> [N, F]


# ---------------- pure-JAX reference (unfused, exact softmax) ----------------
def _gat_layer(h_in, adj, w, a_src_row, a_dst_col, bias_row):
    h = jnp.dot(h_in, w, preferred_element_type=jnp.float32)            # [N, H]
    e_dst = jnp.dot(h, a_dst_col, preferred_element_type=jnp.float32)   # [N, 1]
    e_src = lax.dot_general(a_src_row, h, (((1,), (1,)), ((), ())),
                            preferred_element_type=jnp.float32)         # [1, N]
    z = e_dst + e_src
    z = jnp.where(z >= 0, z, NEG_SLOPE * z)
    z = jnp.where(adj > 0, z, MASK_VAL)
    m = jnp.max(z, axis=-1, keepdims=True)
    p = jnp.exp(z - m)
    p = jnp.where(adj > 0, p, 0.0)
    alpha = p / jnp.sum(p, axis=-1, keepdims=True)
    return jnp.dot(alpha, h, preferred_element_type=jnp.float32) + bias_row


def simple_gnn_reference(x, adj, params):
    h1 = _gat_layer(x, adj, params["w1"], params["a_src1"], params["a_dst1"], params["b1"])
    h1 = jnp.maximum(h1, 0.0)
    h2 = _gat_layer(h1, adj, params["w2"], params["a_src2"], params["a_dst2"], params["b2"])
    n, f = x.shape
    return jnp.pad(h2, ((0, 0), (0, f - 1)))


def edge_index_to_adj(edge_index, num_nodes):
    """adj[dst, src] = 1 for each edge src -> dst, plus self loops (GATConv add_self_loops=True)."""
    src, dst = edge_index
    adj = jnp.zeros((num_nodes, num_nodes), jnp.float32)
    adj = adj.at[dst, src].set(1.0)
    adj = adj + jnp.eye(num_nodes, dtype=jnp.float32)
    return jnp.minimum(adj, 1.0)


if __name__ == "__main__":
    N = 8           # number of nodes
    F = 4           # num_node_features
    H = 10          # hidden_size

    key = jax.random.PRNGKey(0)
    k_x, k_w1, k_a1, k_b1, k_w2, k_a2, k_b2 = jax.random.split(key, 7)

    # Node features
    x = jax.random.normal(k_x, (N, F), jnp.float32)

    # Deterministic ring graph, both directions (edge_index: row0 = src, row1 = dst)
    src = np.concatenate([np.arange(N), (np.arange(N) + 1) % N])
    dst = np.concatenate([(np.arange(N) + 1) % N, np.arange(N)])
    edge_index = jnp.asarray(np.stack([src, dst]), jnp.int32)   # [2, 16]
    adj = edge_index_to_adj(edge_index, N)                      # [8, 8]

    # Deterministic synthetic parameters (shapes from GATConv(F, H) and GATConv(H, 1))
    a1 = jax.random.normal(k_a1, (2, H), jnp.float32) * 0.5
    a2 = jax.random.normal(k_a2, (2, 1), jnp.float32) * 0.5
    params = {
        "w1": jax.random.normal(k_w1, (F, H), jnp.float32) * 0.5,   # lin1.weight.T
        "a_src1": a1[0:1, :],                                       # [1, H]
        "a_dst1": a1[1:2, :].T,                                     # [H, 1]
        "b1": jax.random.normal(k_b1, (1, H), jnp.float32) * 0.1,
        "w2": jax.random.normal(k_w2, (H, 1), jnp.float32) * 0.5,   # lin2.weight.T
        "a_src2": a2[0:1, :],                                       # [1, 1]
        "a_dst2": a2[1:2, :].T,                                     # [1, 1]
        "b2": jax.random.normal(k_b2, (1, 1), jnp.float32) * 0.1,
    }

    out = simple_gnn_forward(x, adj, params)
    out = jax.block_until_ready(out)

    ref = jax.block_until_ready(simple_gnn_reference(x, adj, params))
    np.testing.assert_allclose(np.asarray(out), np.asarray(ref), rtol=1e-2, atol=1e-2)
    assert out.shape == (N, F)

    print("KERNEL_OK")
</pallas_src>

<mosaic_0001>
module attributes {stable_mosaic.version = 11 : i64} {
  func.func @simple_gnn_kernel(%arg0: memref<4xf32, #tpu.memory_space<smem>>, %arg1: memref<24x128xf32, #tpu.memory_space<vmem>>, %arg2: memref<8x128xf32, #tpu.memory_space<vmem>>) attributes {dimension_semantics = [], scalar_prefetch = 0 : i64, scratch_operands = 0 : i64, tpu.core_type = #tpu.core_type<tc>} {
    %c0 = arith.constant 0 : index
    %c0_0 = arith.constant 0 : index
    %0 = vector.load %arg1[%c0, %c0_0] : memref<24x128xf32, #tpu.memory_space<vmem>>, vector<24x128xf32>
    %1 = vector.extract_strided_slice %0 {offsets = [0, 0], sizes = [8, 4], strides = [1, 1]} : vector<24x128xf32> to vector<8x4xf32>
    %2 = vector.extract_strided_slice %0 {offsets = [8, 0], sizes = [8, 8], strides = [1, 1]} : vector<24x128xf32> to vector<8x8xf32>
    %3 = vector.extract_strided_slice %0 {offsets = [16, 0], sizes = [4, 11], strides = [1, 1]} : vector<24x128xf32> to vector<4x11xf32>
    %4 = vector.extract_strided_slice %0 {offsets = [20, 0], sizes = [1, 11], strides = [1, 1]} : vector<24x128xf32> to vector<1x11xf32>
    %5 = vector.extract_strided_slice %0 {offsets = [21, 0], sizes = [1, 11], strides = [1, 1]} : vector<24x128xf32> to vector<1x11xf32>
    %6 = vector.extract_strided_slice %0 {offsets = [22, 0], sizes = [1, 4], strides = [1, 1]} : vector<24x128xf32> to vector<1x4xf32>
    %c0_1 = arith.constant 0 : index
    %7 = memref.load %arg0[%c0_1] : memref<4xf32, #tpu.memory_space<smem>>
    %c1 = arith.constant 1 : index
    %8 = memref.load %arg0[%c1] : memref<4xf32, #tpu.memory_space<smem>>
    %c2 = arith.constant 2 : index
    %9 = memref.load %arg0[%c2] : memref<4xf32, #tpu.memory_space<smem>>
    %cst = arith.constant dense<0.000000e+00> : vector<8x11xf32>
    %10 = tpu.matmul %1, %3, %cst {dimension_numbers = #tpu.dot_dimension_numbers<[1], [0], [0], [1], [0, 0, 1, 1], [], []>} : vector<8x4xf32>, vector<4x11xf32>, vector<8x11xf32> -> vector<8x11xf32>
    %11 = vector.extract_strided_slice %10 {offsets = [0, 0], sizes = [8, 1], strides = [1, 1]} : vector<8x11xf32> to vector<8x1xf32>
    %cst_2 = arith.constant dense<0.000000e+00> : vector<1x8xf32>
    %12 = tpu.matmul %6, %1, %cst_2 {dimension_numbers = #tpu.dot_dimension_numbers<[1], [1], [0], [0], [0, 0, 1, 0], [], []>} : vector<1x4xf32>, vector<8x4xf32>, vector<1x8xf32> -> vector<1x8xf32>
    %13 = vector.broadcast %11 : vector<8x1xf32> to vector<8x8xf32>
    %14 = vector.broadcast %12 : vector<1x8xf32> to vector<8x8xf32>
    %15 = arith.addf %13, %14 : vector<8x8xf32>
    %cst_3 = arith.constant 0.000000e+00 : f32
    %16 = vector.broadcast %cst_3 : f32 to vector<8x8xf32>
    %17 = arith.cmpf oge, %15, %16 : vector<8x8xf32>
    %cst_4 = arith.constant 2.000000e-01 : f32
    %18 = vector.broadcast %cst_4 : f32 to vector<8x8xf32>
    %19 = arith.mulf %18, %15 : vector<8x8xf32>
    %20 = arith.select %17, %15, %19 : vector<8x8xi1>, vector<8x8xf32>
    %cst_5 = arith.constant 0.000000e+00 : f32
    %21 = vector.broadcast %cst_5 : f32 to vector<8x8xf32>
    %22 = arith.cmpf ogt, %2, %21 : vector<8x8xf32>
    %cst_6 = arith.constant -1.000000e+30 : f32
    %23 = vector.broadcast %cst_6 : f32 to vector<8x8xf32>
    %24 = arith.select %22, %20, %23 : vector<8x8xi1>, vector<8x8xf32>
    %cst_7 = arith.constant dense<0xFF800000> : vector<8xf32>
    %25 = vector.multi_reduction <maximumf>, %24, %cst_7 [1] : vector<8x8xf32> to vector<8xf32>
    %26 = vector.shape_cast %25 : vector<8xf32> to vector<8x1xf32>
    %27 = vector.broadcast %26 : vector<8x1xf32> to vector<8x8xf32>
    %28 = arith.subf %24, %27 : vector<8x8xf32>
    %29 = math.exp %28 : vector<8x8xf32>
    %cst_8 = arith.constant dense<0.000000e+00> : vector<8xf32>
    %30 = vector.multi_reduction <add>, %29, %cst_8 [1] : vector<8x8xf32> to vector<8xf32>
    %31 = vector.shape_cast %30 : vector<8xf32> to vector<8x1xf32>
    %cst_9 = arith.constant 9.99999968E-21 : f32
    %32 = vector.broadcast %cst_9 : f32 to vector<8x1xf32>
    %33 = arith.maximumf %31, %32 : vector<8x1xf32>
    %34 = vector.broadcast %33 : vector<8x1xf32> to vector<8x8xf32>
    %35 = arith.divf %29, %34 : vector<8x8xf32>
    %cst_10 = arith.constant dense<0.000000e+00> : vector<8x11xf32>
    %36 = tpu.matmul %35, %10, %cst_10 {dimension_numbers = #tpu.dot_dimension_numbers<[1], [0], [0], [1], [0, 0, 1, 1], [], []>} : vector<8x8xf32>, vector<8x11xf32>, vector<8x11xf32> -> vector<8x11xf32>
    %37 = vector.broadcast %4 : vector<1x11xf32> to vector<8x11xf32>
    %38 = arith.addf %36, %37 : vector<8x11xf32>
    %cst_11 = arith.constant 0.000000e+00 : f32
    %39 = vector.broadcast %cst_11 : f32 to vector<8x11xf32>
    %40 = arith.maximumf %38, %39 : vector<8x11xf32>
    %41 = vector.broadcast %5 : vector<1x11xf32> to vector<8x11xf32>
    %42 = arith.mulf %40, %41 : vector<8x11xf32>
    %cst_12 = arith.constant dense<0.000000e+00> : vector<8xf32>
    %43 = vector.multi_reduction <add>, %42, %cst_12 [1] : vector<8x11xf32> to vector<8xf32>
    %44 = vector.shape_cast %43 : vector<8xf32> to vector<8x1xf32>
    %cst_13 = arith.constant dense<0.000000e+00> : vector<1x8xf32>
    %45 = tpu.matmul %5, %40, %cst_13 {dimension_numbers = #tpu.dot_dimension_numbers<[1], [1], [0], [0], [0, 0, 1, 0], [], []>} : vector<1x11xf32>, vector<8x11xf32>, vector<1x8xf32> -> vector<1x8xf32>
    %46 = vector.broadcast %8 : f32 to vector<8x1xf32>
    %47 = arith.mulf %46, %44 : vector<8x1xf32>
    %48 = vector.broadcast %7 : f32 to vector<1x8xf32>
    %49 = arith.mulf %48, %45 : vector<1x8xf32>
    %50 = vector.broadcast %47 : vector<8x1xf32> to vector<8x8xf32>
    %51 = vector.broadcast %49 : vector<1x8xf32> to vector<8x8xf32>
    %52 = arith.addf %50, %51 : vector<8x8xf32>
    %cst_14 = arith.constant 0.000000e+00 : f32
    %53 = vector.broadcast %cst_14 : f32 to vector<8x8xf32>
    %54 = arith.cmpf oge, %52, %53 : vector<8x8xf32>
    %cst_15 = arith.constant 2.000000e-01 : f32
    %55 = vector.broadcast %cst_15 : f32 to vector<8x8xf32>
    %56 = arith.mulf %55, %52 : vector<8x8xf32>
    %57 = arith.select %54, %52, %56 : vector<8x8xi1>, vector<8x8xf32>
    %cst_16 = arith.constant 0.000000e+00 : f32
    %58 = vector.broadcast %cst_16 : f32 to vector<8x8xf32>
    %59 = arith.cmpf ogt, %2, %58 : vector<8x8xf32>
    %cst_17 = arith.constant -1.000000e+30 : f32
    %60 = vector.broadcast %cst_17 : f32 to vector<8x8xf32>
    %61 = arith.select %59, %57, %60 : vector<8x8xi1>, vector<8x8xf32>
    %cst_18 = arith.constant dense<0xFF800000> : vector<8xf32>
    %62 = vector.multi_reduction <maximumf>, %61, %cst_18 [1] : vector<8x8xf32> to vector<8xf32>
    %63 = vector.shape_cast %62 : vector<8xf32> to vector<8x1xf32>
    %64 = vector.broadcast %63 : vector<8x1xf32> to vector<8x8xf32>
    %65 = arith.subf %61, %64 : vector<8x8xf32>
    %66 = math.exp %65 : vector<8x8xf32>
    %cst_19 = arith.constant dense<0.000000e+00> : vector<8xf32>
    %67 = vector.multi_reduction <add>, %66, %cst_19 [1] : vector<8x8xf32> to vector<8xf32>
    %68 = vector.shape_cast %67 : vector<8xf32> to vector<8x1xf32>
    %cst_20 = arith.constant 9.99999968E-21 : f32
    %69 = vector.broadcast %cst_20 : f32 to vector<8x1xf32>
    %70 = arith.maximumf %68, %69 : vector<8x1xf32>
    %71 = vector.broadcast %45 : vector<1x8xf32> to vector<8x8xf32>
    %72 = arith.mulf %66, %71 : vector<8x8xf32>
    %cst_21 = arith.constant dense<0.000000e+00> : vector<8xf32>
    %73 = vector.multi_reduction <add>, %72, %cst_21 [1] : vector<8x8xf32> to vector<8xf32>
    %74 = vector.shape_cast %73 : vector<8xf32> to vector<8x1xf32>
    %75 = tpu.reciprocal %70 {approx = true} : vector<8x1xf32> -> vector<8x1xf32>
    %76 = arith.mulf %74, %75 : vector<8x1xf32>
    %77 = vector.broadcast %9 : f32 to vector<8x1xf32>
    %78 = arith.addf %76, %77 : vector<8x1xf32>
    %79 = tpu.iota {dimensions = array<i32: 1>} : vector<8x128xi32>
    %c0_i32 = arith.constant 0 : i32
    %80 = vector.broadcast %c0_i32 : i32 to vector<8x128xi32>
    %81 = arith.cmpi eq, %79, %80 : vector<8x128xi32>
    %cst_22 = arith.constant 0.000000e+00 : f32
    %82 = vector.shape_cast %78 : vector<8x1xf32> to vector<8x1xf32>
    %83 = vector.broadcast %82 : vector<8x1xf32> to vector<8x128xf32>
    %84 = vector.broadcast %cst_22 : f32 to vector<8x128xf32>
    %85 = arith.select %81, %83, %84 : vector<8x128xi1>, vector<8x128xf32>
    %c0_23 = arith.constant 0 : index
    %c0_24 = arith.constant 0 : index
    %86 = vector.load %arg2[%c0_23, %c0_24] : memref<8x128xf32, #tpu.memory_space<vmem>>, vector<8x128xf32>
    tpu.vector_store %arg2[%c0_23, %c0_24], %85 {strides = array<i32>} : memref<8x128xf32, #tpu.memory_space<vmem>>, vector<8x128xf32>,
    return
  }
}

</mosaic_0001>

<llo_original>
// kernel: tpu_custom_call.1
$region0: #{tpu_custom_call.1}
  #allocation0 [shape = 'u32[]', space=smem, size = 0x4, offset = 0x4, fixed_abs, tag = 'smem constant byte address 0x4 - core index']
  #allocation1 [shape = 'u32[144,128]{1,0:T(1,128)}', space=vmem, size = 0x12000, scoped, tag = 'internal scratch']
  %s0 = inlined_call_operand.hbm [shape: f32[4], index: 0, kind: input, shape index: {}]
  %s1 = inlined_call_operand.hbm [shape: f32[24,128], index: 1, kind: input, shape index: {}]
  %s2 = inlined_call_operand.hbm [shape: f32[8,128], index: 2, kind: output, shape index: {}]
  %s3 = sld [smem:[#allocation0]]
  $region26: #{tpu_custom_call.1} parent=0
    _
  %s5 = ssub.s32 1, %s3
  %s6 = scalar_select 0, %s5, %s3
  $region1: #{tpu_custom_call.1} parent=0
    #allocation2 [shape = 'u8[512]{0}', space=smem, size = 0x200, scoped, tag = 'input window, operand 0, single buffered']
    #allocation3 [shape = 's32[1]{0}', space=sflag, size = 0x4, scoped, tag = 'scoped memory for tpu_custom_call.1']
    #allocation4 [shape = 's32[1]{0}', space=sflag, size = 0x4, scoped, tag = 'scoped memory for tpu_custom_call.1']
    #allocation5 [shape = 's32[1]{0}', space=sflag, size = 0x4, scoped, tag = 'scoped memory for tpu_custom_call.1']
    #allocation6 [shape = 'u8[12288]{0}', space=vmem, size = 0x3000, scoped, tag = 'input window, operand 1, single buffered']
    #allocation7 [shape = 'u8[4096]{0}', space=vmem, size = 0x1000, scoped, tag = 'output window, operand 0, single buffered']
    %7 = vsyncpa [#allocation5], 0
    %8 = vsyncpa [#allocation3], 0
    %9 = vsyncpa [#allocation4], 0
    // Predicated region
    $region2: #{tpu_custom_call.1} parent=1 // pred_check
      _
    $region3: #{tpu_custom_call.1} parent=1 // pred_check_branch
      %11 = sbr.rel (0) target = $region5
    $region4: #{tpu_custom_call.1} parent=1 // pred_region
      %s13 = ssub.s32 16, 16
      %14 = vsyncadd [#allocation5], %s13
      %17 = dma.hbm_to_smem %s0, 16, [#allocation2], [#allocation5]
    $region5: #{tpu_custom_call.1} parent=1 // pred_fallthru
      _
    // Predicated region
    $region6: #{tpu_custom_call.1} parent=1 // pred_check
      _
    $region7: #{tpu_custom_call.1} parent=1 // pred_check_branch
      %19 = sbr.rel (0) target = $region9
    $region8: #{tpu_custom_call.1} parent=1 // pred_region
      %s21 = ssub.s32 384, 384
      %22 = vsyncadd [#allocation3], %s21
      %s23 = sshll.u32 [#allocation6], 4
      %s24 = int_to_ptr.vmem [resolvable:$true] %s23
      %29 = dma.hbm_to_vmem [thread:$0]  %s1, 384, %s24, [#allocation3], 128, 128, 8
    $region9: #{tpu_custom_call.1} parent=1 // pred_fallthru
      _
    // Predicated region
    $region10: #{tpu_custom_call.1} parent=1 // pred_check
      _
    $region11: #{tpu_custom_call.1} parent=1 // pred_check_branch
      %31 = sbr.rel (0) target = $region13
    $region12: #{tpu_custom_call.1} parent=1 // pred_region
      %32 = dma.done [#allocation5], 16
    $region13: #{tpu_custom_call.1} parent=1 // pred_fallthru
      _
    // Predicated region
    $region14: #{tpu_custom_call.1} parent=1 // pred_check
      _
    $region15: #{tpu_custom_call.1} parent=1 // pred_check_branch
      %34 = sbr.rel (0) target = $region17
    $region16: #{tpu_custom_call.1} parent=1 // pred_region
      %35 = dma.done [#allocation3], 384
    $region17: #{tpu_custom_call.1} parent=1 // pred_fallthru
      _
    %36 = sfence
    %v37 = vld [vmem:[#allocation6] sm:$0xff]
    %v38 = vld [vmem:[#allocation6 + $0x8] sm:$0xff]
    %v39 = vld [vmem:[#allocation6 + $0x10] sm:$0xff]
    %s40 = sld [smem:[#allocation2]]
    %s41 = sld [smem:[#allocation2 + $0x1]]
    %s42 = sld [smem:[#allocation2 + $0x2]]
    %vm43 = vcmask 31744
    %v45 = vsel %vm43, %v37, 0
    %vm47 = vcmask 1043456
    %v49 = vsel %vm47, %v39, 0
    %51 = vmatprep.subr.mxu0 0.0
    %52 = vmatpush1.msra.mxu0 %v49
    %53 = vmatprep.subr.mxu0 0.0
    %54 = vmatpush1.msra.mxu0 0.0
    %55 = vmatprep.subr.mxu0 0.0
    %56 = vmatpush1.msra.mxu0 0.0
    %57 = vmatprep.subr.mxu0 0.0
    %58 = vmatpush1.msra.mxu0 0.0
    %59 = vmatprep.subr.mxu0 0.0
    %60 = vmatpush1.msra.mxu0 0.0
    %61 = vmatprep.subr.mxu0 0.0
    %62 = vmatpush1.msra.mxu0 0.0
    %63 = vmatprep.subr.mxu0 0.0
    %64 = vmatpush1.msra.mxu0 0.0
    %65 = vmatprep.subr.mxu0 0.0
    %66 = vmatpush1.msra.mxu0 0.0
    %67 = vmatprep.subr.mxu0 0.0
    %68 = vmatpush1.msra.mxu0 0.0
    %69 = vmatprep.subr.mxu0 0.0
    %70 = vmatpush1.msra.mxu0 0.0
    %71 = vmatprep.subr.mxu0 0.0
    %72 = vmatpush1.msra.mxu0 0.0
    %73 = vmatprep.subr.mxu0 0.0
    %74 = vmatpush1.msra.mxu0 0.0
    %75 = vmatprep.subr.mxu0 0.0
    %76 = vmatpush1.msra.mxu0 0.0
    %77 = vmatprep.subr.mxu0 0.0
    %78 = vmatpush1.msra.mxu0 0.0
    %79 = vmatprep.subr.mxu0 0.0
    %80 = vmatpush1.msra.mxu0 0.0
    %81 = vmatprep.subr.mxu0 0.0
    %82 = vmatpush1.msra.mxu0 0.0
    %83 = vmatprep.subr.mxu0 0.0
    %84 = vmatpush1.msra.mxu0 0.0
    %85 = vmatprep.subr.mxu0 0.0
    %86 = vmatpush1.msra.mxu0 0.0
    %87 = vmatprep.subr.mxu0 0.0
    %88 = vmatpush1.msra.mxu0 0.0
    %89 = vmatprep.subr.mxu0 0.0
    %90 = vmatpush1.msra.mxu0 0.0
    %91 = vmatprep.subr.mxu0 0.0
    %92 = vmatpush1.msra.mxu0 0.0
    %93 = vmatprep.subr.mxu0 0.0
    %94 = vmatpush1.msra.mxu0 0.0
    %95 = vmatprep.subr.mxu0 0.0
    %96 = vmatpush1.msra.mxu0 0.0
    %97 = vmatprep.subr.mxu0 0.0
    %98 = vmatpush1.msra.mxu0 0.0
    %99 = vmatprep.subr.mxu0 0.0
    %100 = vmatpush1.msra.mxu0 0.0
    %101 = vmatprep.subr.mxu0 0.0
    %102 = vmatpush1.msra.mxu0 0.0
    %103 = vmatprep.subr.mxu0 0.0
    %104 = vmatpush1.msra.mxu0 0.0
    %105 = vmatprep.subr.mxu0 0.0
    %106 = vmatpush1.msra.mxu0 0.0
    %107 = vmatprep.subr.mxu0 0.0
    %108 = vmatpush1.msra.mxu0 0.0
    %109 = vmatprep.subr.mxu0 0.0
    %110 = vmatpush1.msra.mxu0 0.0
    %111 = vmatprep.subr.mxu0 0.0
    %112 = vmatpush1.msra.mxu0 0.0
    %113 = vmatprep.subr.mxu0 0.0
    %114 = vmatpush1.msra.mxu0 0.0
    %115 = vmatprep.mubr.f32.mxu0 0.0
    %116 = vmatmul.mubr.f32.gmra.mrb[0].mxu0 %v45
    %v117 = vpop.f32.mrb[0].mxu0
    %v118 = vadd.f32 0.0, %v117
    %v119 = vpop.f32.mrb[0].mxu0
    %120 = vdwg.mxu0
    %v121 = vrot.slane %v39, 6
    %v122 = vsel %vm43, %v121, 0
    %124 = vmatprep.subr.mxu0 0.0
    %125 = vmatpush1.xpose.msra.mxu0 %v45
    %126 = vmatprep.subr.mxu0 0.0
    %127 = vmatpush1.xpose.msra.mxu0 0.0
    %128 = vmatprep.subr.mxu0 0.0
    %129 = vmatpush1.xpose.msra.mxu0 0.0
    %130 = vmatprep.subr.mxu0 0.0
    %131 = vmatpush1.xpose.msra.mxu0 0.0
    %132 = vmatprep.subr.mxu0 0.0
    %133 = vmatpush1.xpose.msra.mxu0 0.0
    %134 = vmatprep.subr.mxu0 0.0
    %135 = vmatpush1.xpose.msra.mxu0 0.0
    %136 = vmatprep.subr.mxu0 0.0
    %137 = vmatpush1.xpose.msra.mxu0 0.0
    %138 = vmatprep.subr.mxu0 0.0
    %139 = vmatpush1.xpose.msra.mxu0 0.0
    %140 = vmatprep.subr.mxu0 0.0
    %141 = vmatpush1.xpose.msra.mxu0 0.0
    %142 = vmatprep.subr.mxu0 0.0
    %143 = vmatpush1.xpose.msra.mxu0 0.0
    %144 = vmatprep.subr.mxu0 0.0
    %145 = vmatpush1.xpose.msra.mxu0 0.0
    %146 = vmatprep.subr.mxu0 0.0
    %147 = vmatpush1.xpose.msra.mxu0 0.0
    %148 = vmatprep.subr.mxu0 0.0
    %149 = vmatpush1.xpose.msra.mxu0 0.0
    %150 = vmatprep.subr.mxu0 0.0
    %151 = vmatpush1.xpose.msra.mxu0 0.0
    %152 = vmatprep.subr.mxu0 0.0
    %153 = vmatpush1.xpose.msra.mxu0 0.0
    %154 = vmatprep.subr.mxu0 0.0
    %155 = vmatpush1.xpose.msra.mxu0 0.0
    %156 = vmatprep.subr.mxu0 0.0
    %157 = vmatpush1.xpose.msra.mxu0 0.0
    %158 = vmatprep.subr.mxu0 0.0
    %159 = vmatpush1.xpose.msra.mxu0 0.0
    %160 = vmatprep.subr.mxu0 0.0
    %161 = vmatpush1.xpose.msra.mxu0 0.0
    %162 = vmatprep.subr.mxu0 0.0
    %163 = vmatpush1.xpose.msra.mxu0 0.0
    %164 = vmatprep.subr.mxu0 0.0
    %165 = vmatpush1.xpose.msra.mxu0 0.0
    %166 = vmatprep.subr.mxu0 0.0
    %167 = vmatpush1.xpose.msra.mxu0 0.0
    %168 = vmatprep.subr.mxu0 0.0
    %169 = vmatpush1.xpose.msra.mxu0 0.0
    %170 = vmatprep.subr.mxu0 0.0
    %171 = vmatpush1.xpose.msra.mxu0 0.0
    %172 = vmatprep.subr.mxu0 0.0
    %173 = vmatpush1.xpose.msra.mxu0 0.0
    %174 = vmatprep.subr.mxu0 0.0
    %175 = vmatpush1.xpose.msra.mxu0 0.0
    %176 = vmatprep.subr.mxu0 0.0
    %177 = vmatpush1.xpose.msra.mxu0 0.0
    %178 = vmatprep.subr.mxu0 0.0
    %179 = vmatpush1.xpose.msra.mxu0 0.0
    %180 = vmatprep.subr.mxu0 0.0
    %181 = vmatpush1.xpose.msra.mxu0 0.0
    %182 = vmatprep.subr.mxu0 0.0
    %183 = vmatpush1.xpose.msra.mxu0 0.0
    %184 = vmatprep.subr.mxu0 0.0
    %185 = vmatpush1.xpose.msra.mxu0 0.0
    %186 = vmatprep.subr.mxu0 0.0
    %187 = vmatpush1.xpose.msra.mxu0 0.0
    %188 = vmatprep.mubr.f32.mxu0 0.0
    %189 = vmatmul.mubr.f32.gmra.mrb[0].mxu0 %v122
    %v190 = vpop.f32.mrb[0].mxu0
    %v191 = vadd.f32 0.0, %v190
    %v192 = vpop.f32.mrb[0].mxu0
    %193 = vdwg.mxu0
    %195 = vset.pattern.permute.xlu0 0
    %196 = vperm.xlu0 %195, %v118
    %v197 = vpop.permute.xlu0 %196
    %v199 = vlaneseq
    %v200 = vshrl.u32 %v199, 7
    %v201 = vsub.s32 0, %v200
    %v202 = vrot.slane %v191, %v201
    %v203 = vadd.f32 %v197, %v202
    %vm204 = vcmp.ge.f32.partialorder %v203, 0.0
    %v205 = vmul.f32 %v203, 0.2
    %v206 = vsel %vm204, %v203, %v205
    %vm207 = vcmp.gt.f32.partialorder %v38, 0.0
    %v208 = vsel %vm207, %v206, -1e+30
    %vm209 = vcmask 64512
    %v210 = vsel %vm209, %v208, -inf
    %211 = vmax.xlane.f32.xlu0 %v210
    %v212 = vpop.xlane.xlu0 %211
    %v213 = vsub.f32 %v208, %v212
    %v214 = vmul.f32 %v213, 1.442695
    %v215 = vpow.pop %v214
    %v216 = vsel %vm209, %v215, 0.0
    %217 = vadd.xlane.f32.xlu0 %v216
    %v218 = vpop.xlane.xlu0 %217
    %v219 = vmax.f32 %v218, 1e-20
    %v220 = vrcp.pop %v219
    %v221 = vmul.f32 %v215, %v220
    %v222 = vlaneseq
    %v223 = vshrl.u32 %v222, 7
    %v224 = vsub.s32 4, %v223
    %v225 = vrot.slane %v39, %v224
    %v227 = vsel %vm209, %v221, 0
    %229 = vmatprep.subr.mxu0 0.0
    %230 = vmatpush1.msra.mxu0 %v118
    %231 = vmatprep.subr.mxu0 0.0
    %232 = vmatpush1.msra.mxu0 0.0
    %233 = vmatprep.subr.mxu0 0.0
    %234 = vmatpush1.msra.mxu0 0.0
    %235 = vmatprep.subr.mxu0 0.0
    %236 = vmatpush1.msra.mxu0 0.0
    %237 = vmatprep.subr.mxu0 0.0
    %238 = vmatpush1.msra.mxu0 0.0
    %239 = vmatprep.subr.mxu0 0.0
    %240 = vmatpush1.msra.mxu0 0.0
    %241 = vmatprep.subr.mxu0 0.0
    %242 = vmatpush1.msra.mxu0 0.0
    %243 = vmatprep.subr.mxu0 0.0
    %244 = vmatpush1.msra.mxu0 0.0
    %245 = vmatprep.subr.mxu0 0.0
    %246 = vmatpush1.msra.mxu0 0.0
    %247 = vmatprep.subr.mxu0 0.0
    %248 = vmatpush1.msra.mxu0 0.0
    %249 = vmatprep.subr.mxu0 0.0
    %250 = vmatpush1.msra.mxu0 0.0
    %251 = vmatprep.subr.mxu0 0.0
    %252 = vmatpush1.msra.mxu0 0.0
    %253 = vmatprep.subr.mxu0 0.0
    %254 = vmatpush1.msra.mxu0 0.0
    %255 = vmatprep.subr.mxu0 0.0
    %256 = vmatpush1.msra.mxu0 0.0
    %257 = vmatprep.subr.mxu0 0.0
    %258 = vmatpush1.msra.mxu0 0.0
    %259 = vmatprep.subr.mxu0 0.0
    %260 = vmatpush1.msra.mxu0 0.0
    %261 = vmatprep.subr.mxu0 0.0
    %262 = vmatpush1.msra.mxu0 0.0
    %263 = vmatprep.subr.mxu0 0.0
    %264 = vmatpush1.msra.mxu0 0.0
    %265 = vmatprep.subr.mxu0 0.0
    %266 = vmatpush1.msra.mxu0 0.0
    %267 = vmatprep.subr.mxu0 0.0
    %268 = vmatpush1.msra.mxu0 0.0
    %269 = vmatprep.subr.mxu0 0.0
    %270 = vmatpush1.msra.mxu0 0.0
    %271 = vmatprep.subr.mxu0 0.0
    %272 = vmatpush1.msra.mxu0 0.0
    %273 = vmatprep.subr.mxu0 0.0
    %274 = vmatpush1.msra.mxu0 0.0
    %275 = vmatprep.subr.mxu0 0.0
    %276 = vmatpush1.msra.mxu0 0.0
    %277 = vmatprep.subr.mxu0 0.0
    %278 = vmatpush1.msra.mxu0 0.0
    %279 = vmatprep.subr.mxu0 0.0
    %280 = vmatpush1.msra.mxu0 0.0
    %281 = vmatprep.subr.mxu0 0.0
    %282 = vmatpush1.msra.mxu0 0.0
    %283 = vmatprep.subr.mxu0 0.0
    %284 = vmatpush1.msra.mxu0 0.0
    %285 = vmatprep.subr.mxu0 0.0
    %286 = vmatpush1.msra.mxu0 0.0
    %287 = vmatprep.subr.mxu0 0.0
    %288 = vmatpush1.msra.mxu0 0.0
    %289 = vmatprep.subr.mxu0 0.0
    %290 = vmatpush1.msra.mxu0 0.0
    %291 = vmatprep.subr.mxu0 0.0
    %292 = vmatpush1.msra.mxu0 0.0
    %293 = vmatprep.mubr.f32.mxu0 0.0
    %294 = vmatmul.mubr.f32.gmra.mrb[0].mxu0 %v227
    %v295 = vpop.f32.mrb[0].mxu0
    %v296 = vadd.f32 %v225, %v295
    %v297 = vpop.f32.mrb[0].mxu0
    %298 = vdwg.mxu0
    %v299 = vmax.f32 %v296, 0.0
    %v300 = vlaneseq
    %v301 = vshrl.u32 %v300, 7
    %v302 = vsub.s32 5, %v301
    %v303 = vrot.slane %v39, %v302
    %v304 = vmul.f32 %v299, %v303
    %vm305 = vcmask 89088
    %v306 = vsel %vm305, %v304, 0.0
    %307 = vadd.xlane.f32.xlu0 %v306
    %v308 = vpop.xlane.xlu0 %307
    %v309 = vrot.slane %v39, 5
    %v310 = vsel %vm305, %v309, 0
    %v313 = vsel %vm305, %v299, 0
    %315 = vmatprep.subr.mxu0 0.0
    %316 = vmatpush1.xpose.msra.mxu0 %v313
    %317 = vmatprep.subr.mxu0 0.0
    %318 = vmatpush1.xpose.msra.mxu0 0.0
    %319 = vmatprep.subr.mxu0 0.0
    %320 = vmatpush1.xpose.msra.mxu0 0.0
    %321 = vmatprep.subr.mxu0 0.0
    %322 = vmatpush1.xpose.msra.mxu0 0.0
    %323 = vmatprep.subr.mxu0 0.0
    %324 = vmatpush1.xpose.msra.mxu0 0.0
    %325 = vmatprep.subr.mxu0 0.0
    %326 = vmatpush1.xpose.msra.mxu0 0.0
    %327 = vmatprep.subr.mxu0 0.0
    %328 = vmatpush1.xpose.msra.mxu0 0.0
    %329 = vmatprep.subr.mxu0 0.0
    %330 = vmatpush1.xpose.msra.mxu0 0.0
    %331 = vmatprep.subr.mxu0 0.0
    %332 = vmatpush1.xpose.msra.mxu0 0.0
    %333 = vmatprep.subr.mxu0 0.0
    %334 = vmatpush1.xpose.msra.mxu0 0.0
    %335 = vmatprep.subr.mxu0 0.0
    %336 = vmatpush1.xpose.msra.mxu0 0.0
    %337 = vmatprep.subr.mxu0 0.0
    %338 = vmatpush1.xpose.msra.mxu0 0.0
    %339 = vmatprep.subr.mxu0 0.0
    %340 = vmatpush1.xpose.msra.mxu0 0.0
    %341 = vmatprep.subr.mxu0 0.0
    %342 = vmatpush1.xpose.msra.mxu0 0.0
    %343 = vmatprep.subr.mxu0 0.0
    %344 = vmatpush1.xpose.msra.mxu0 0.0
    %345 = vmatprep.subr.mxu0 0.0
    %346 = vmatpush1.xpose.msra.mxu0 0.0
    %347 = vmatprep.subr.mxu0 0.0
    %348 = vmatpush1.xpose.msra.mxu0 0.0
    %349 = vmatprep.subr.mxu0 0.0
    %350 = vmatpush1.xpose.msra.mxu0 0.0
    %351 = vmatprep.subr.mxu0 0.0
    %352 = vmatpush1.xpose.msra.mxu0 0.0
    %353 = vmatprep.subr.mxu0 0.0
    %354 = vmatpush1.xpose.msra.mxu0 0.0
    %355 = vmatprep.subr.mxu0 0.0
    %356 = vmatpush1.xpose.msra.mxu0 0.0
    %357 = vmatprep.subr.mxu0 0.0
    %358 = vmatpush1.xpose.msra.mxu0 0.0
    %359 = vmatprep.subr.mxu0 0.0
    %360 = vmatpush1.xpose.msra.mxu0 0.0
    %361 = vmatprep.subr.mxu0 0.0
    %362 = vmatpush1.xpose.msra.mxu0 0.0
    %363 = vmatprep.subr.mxu0 0.0
    %364 = vmatpush1.xpose.msra.mxu0 0.0
    %365 = vmatprep.subr.mxu0 0.0
    %366 = vmatpush1.xpose.msra.mxu0 0.0
    %367 = vmatprep.subr.mxu0 0.0
    %368 = vmatpush1.xpose.msra.mxu0 0.0
    %369 = vmatprep.subr.mxu0 0.0
    %370 = vmatpush1.xpose.msra.mxu0 0.0
    %371 = vmatprep.subr.mxu0 0.0
    %372 = vmatpush1.xpose.msra.mxu0 0.0
    %373 = vmatprep.subr.mxu0 0.0
    %374 = vmatpush1.xpose.msra.mxu0 0.0
    %375 = vmatprep.subr.mxu0 0.0
    %376 = vmatpush1.xpose.msra.mxu0 0.0
    %377 = vmatprep.subr.mxu0 0.0
    %378 = vmatpush1.xpose.msra.mxu0 0.0
    %379 = vmatprep.mubr.f32.mxu0 0.0
    %380 = vmatmul.mubr.f32.gmra.mrb[0].mxu0 %v310
    %v381 = vpop.f32.mrb[0].mxu0
    %v382 = vadd.f32 0.0, %v381
    %v383 = vpop.f32.mrb[0].mxu0
    %384 = vdwg.mxu0
    %v385 = vstv %s41
    %v386 = vmul.f32 %v385, %v308
    %v387 = vstv %s40
    %v388 = vmul.f32 %v387, %v382
    %v389 = vlaneseq
    %v390 = vshrl.u32 %v389, 7
    %v391 = vsub.s32 0, %v390
    %v392 = vrot.slane %v388, %v391
    %v393 = vadd.f32 %v386, %v392
    %vm394 = vcmp.ge.f32.partialorder %v393, 0.0
    %v395 = vmul.f32 %v393, 0.2
    %v396 = vsel %vm394, %v393, %v395
    %v397 = vsel %vm207, %v396, -1e+30
    %v398 = vsel %vm209, %v397, -inf
    %399 = vmax.xlane.f32.xlu0 %v398
    %v400 = vpop.xlane.xlu0 %399
    %v401 = vsub.f32 %v397, %v400
    %v402 = vmul.f32 %v401, 1.442695
    %v403 = vpow.pop %v402
    %v404 = vsel %vm209, %v403, 0.0
    %405 = vadd.xlane.f32.xlu0 %v404
    %v406 = vpop.xlane.xlu0 %405
    %v407 = vmax.f32 %v406, 1e-20
    %v408 = vlaneseq
    %v409 = vshrl.u32 %v408, 7
    %v410 = vsub.s32 0, %v409
    %v411 = vrot.slane %v382, %v410
    %v412 = vmul.f32 %v403, %v411
    %v413 = vsel %vm209, %v412, 0.0
    %414 = vadd.xlane.f32.xlu0 %v413
    %v415 = vpop.xlane.xlu0 %414
    %v416 = vrcp.pop %v407
    %v417 = vmul.f32 %v415, %v416
    %v418 = vstv %s42
    %v419 = vadd.f32 %v417, %v418
    %v420 = vlaneseq
    %v421 = vand.u32 %v420, 127
    %vm422 = vcmp.eq.s32.totalorder %v421, 0
    %v423 = vsel %vm422, %v419, 0.0
    %424 = vst [vmem:[#allocation7] sm:$0xff] %v423
    // Predicated region
    $region18: #{tpu_custom_call.1} parent=1 // pred_check
      _
    $region19: #{tpu_custom_call.1} parent=1 // pred_check_branch
      %426 = sbr.rel (0) target = $region21
    $region20: #{tpu_custom_call.1} parent=1 // pred_region
      %s428 = ssub.s32 128, 128
      %429 = vsyncadd [#allocation4], %s428
      %s431 = sshll.u32 [#allocation7], 4
      %s432 = int_to_ptr.vmem [resolvable:$true] %s431
      %434 = dma.vmem_to_hbm [thread:$0]  %s432, 128, %s2, [#allocation4]
    $region21: #{tpu_custom_call.1} parent=1 // pred_fallthru
      _
    // Predicated region
    $region22: #{tpu_custom_call.1} parent=1 // pred_check
      _
    $region23: #{tpu_custom_call.1} parent=1 // pred_check_branch
      %436 = sbr.rel (0) target = $region25
    $region24: #{tpu_custom_call.1} parent=1 // pred_region
      %437 = dma.done [#allocation4], 128
    $region25: #{tpu_custom_call.1} parent=1 // pred_fallthru
      _
    %438 = vsyncpa [#allocation3], 1
    %439 = vsyncpa [#allocation4], 1
    %440 = vsyncpa [#allocation5], 1

</llo_original>
